<compile_context>
chip_gen: v7x
topology: tpu7x:2x2x1
jax: 0.10.0
libtpu: 0.0.40
codegen_flags: <defaults>
</compile_context>

<pallas_src>
import functools

import jax
import jax.numpy as jnp
from jax import lax
from jax.experimental import pallas as pl
from jax.experimental.pallas import tpu as pltpu


def _linear_kernel(x_ref, w_ref, o_ref):
    # y = x @ W.T, contracting the feature axis of both operands in-kernel
    # (no materialized transpose). Accumulate in f32 on the MXU.
    o_ref[...] = lax.dot_general(
        x_ref[...],
        w_ref[...],
        dimension_numbers=(((1,), (1,)), ((), ())),
        preferred_element_type=jnp.float32,
    ).astype(o_ref.dtype)


@functools.partial(jax.jit, static_argnames=("block_n",))
def dynamics_back_forward(x, w, *, block_n: int = 1024):
    """Pallas implementation of dynamics_back.forward.

    x: (N, b + action_dim)
    w: (b, b + action_dim)   -- the nn.Linear weight, NOT pre-transposed
    returns: (N, b)
    """
    n, k = x.shape
    b, k2 = w.shape
    assert k == k2, (k, k2)
    out_shape = jax.ShapeDtypeStruct((n, b), x.dtype)

    if n <= block_n:
        # Tiny problem: one grid-less invocation, everything resident in VMEM.
        # Avoids the double-buffer/pipeline prologue+epilogue of a 1-point grid.
        return pl.pallas_call(
            _linear_kernel,
            out_shape=out_shape,
            in_specs=[
                pl.BlockSpec(memory_space=pltpu.MemorySpace.VMEM),
                pl.BlockSpec(memory_space=pltpu.MemorySpace.VMEM),
            ],
            out_specs=pl.BlockSpec(memory_space=pltpu.MemorySpace.VMEM),
        )(x, w)

    # Large batch: tile rows only; weight stays fully resident across steps.
    # Row axis is embarrassingly parallel -> "parallel" (2x on v7x dual-TC,
    # harmless on v5e/v6e).
    grid = (pl.cdiv(n, block_n),)
    return pl.pallas_call(
        _linear_kernel,
        out_shape=out_shape,
        grid=grid,
        in_specs=[
            pl.BlockSpec((block_n, k), lambda i: (i, 0)),
            pl.BlockSpec((b, k), lambda i: (0, 0)),
        ],
        out_specs=pl.BlockSpec((block_n, b), lambda i: (i, 0)),
        compiler_params=pltpu.CompilerParams(
            dimension_semantics=("parallel",)
        ),
    )(x, w)


if __name__ == "__main__":
    key = jax.random.PRNGKey(0)
    k_omega, k_x, k_xl = jax.random.split(key, 3)

    # Shapes consistent with the module: Koopman latent b = 32, action_dim = 16.
    b_dim = 32
    action_dim = 16
    in_features = b_dim + action_dim

    # Simulate omega.dynamics.weight (b, b + action_dim); dynamics_back's weight
    # is pinverse(omega_weight.T), also (b, b + action_dim). This mirrors the
    # PyTorch __init__; it is setup-time work, not part of forward.
    omega_weight = jax.random.normal(k_omega, (b_dim, in_features), dtype=jnp.float32)
    back_weight = jnp.linalg.pinv(omega_weight.T)  # (b, b + action_dim)

    # --- small batch: exercises the grid-less single-invocation path ---
    batch = 8
    x = jax.random.normal(k_x, (batch, in_features), dtype=jnp.float32)
    y = jax.block_until_ready(dynamics_back_forward(x, back_weight))
    y_ref = x @ back_weight.T
    assert y.shape == (batch, b_dim)
    assert jnp.allclose(y, y_ref, atol=1e-4, rtol=1e-4)

    # --- larger batch: exercises the row-tiled, "parallel" grid path ---
    batch_l = 2048
    x_l = jax.random.normal(k_xl, (batch_l, in_features), dtype=jnp.float32)
    y_l = jax.block_until_ready(dynamics_back_forward(x_l, back_weight))
    y_l_ref = x_l @ back_weight.T
    assert y_l.shape == (batch_l, b_dim)
    assert jnp.allclose(y_l, y_l_ref, atol=1e-4, rtol=1e-4)

    print("KERNEL_OK")
</pallas_src>

<mosaic_0001>
module attributes {stable_mosaic.version = 11 : i64} {
  func.func @_linear_kernel(%arg0: memref<8x48xf32, #tpu.memory_space<vmem>>, %arg1: memref<32x48xf32, #tpu.memory_space<vmem>>, %arg2: memref<8x32xf32, #tpu.memory_space<vmem>>) attributes {dimension_semantics = [], scalar_prefetch = 0 : i64, scratch_operands = 0 : i64, tpu.core_type = #tpu.core_type<tc>} {
    %c0 = arith.constant 0 : index
    %c0_0 = arith.constant 0 : index
    %0 = vector.load %arg0[%c0, %c0_0] : memref<8x48xf32, #tpu.memory_space<vmem>>, vector<8x48xf32>
    %c0_1 = arith.constant 0 : index
    %c0_2 = arith.constant 0 : index
    %1 = vector.load %arg1[%c0_1, %c0_2] : memref<32x48xf32, #tpu.memory_space<vmem>>, vector<32x48xf32>
    %cst = arith.constant dense<0.000000e+00> : vector<8x32xf32>
    %2 = tpu.matmul %0, %1, %cst {dimension_numbers = #tpu.dot_dimension_numbers<[1], [1], [0], [0], [0, 0, 1, 0], [], []>} : vector<8x48xf32>, vector<32x48xf32>, vector<8x32xf32> -> vector<8x32xf32>
    %c0_3 = arith.constant 0 : index
    %c0_4 = arith.constant 0 : index
    %3 = vector.load %arg2[%c0_3, %c0_4] : memref<8x32xf32, #tpu.memory_space<vmem>>, vector<8x32xf32>
    tpu.vector_store %arg2[%c0_3, %c0_4], %2 {strides = array<i32>} : memref<8x32xf32, #tpu.memory_space<vmem>>, vector<8x32xf32>,
    return
  }
}

</mosaic_0001>

<llo_original>
// kernel: dynamics_back_forward.1
$region0: #{dynamics_back_forward.1}
  #allocation0 [shape = 'u32[]', space=smem, size = 0x4, offset = 0x4, fixed_abs, tag = 'smem constant byte address 0x4 - core index']
  #allocation1 [shape = 'u32[144,128]{1,0:T(1,128)}', space=vmem, size = 0x12000, scoped, tag = 'internal scratch']
  %s0 = inlined_call_operand.hbm [shape: f32[8,48], index: 0, kind: input, shape index: {}]
  %s1 = inlined_call_operand.hbm [shape: f32[32,48], index: 1, kind: input, shape index: {}]
  %s2 = inlined_call_operand.hbm [shape: f32[8,32], index: 2, kind: output, shape index: {}]
  %s3 = sld [smem:[#allocation0]]
  $region26: #{dynamics_back_forward.1} parent=0
    _
  %s5 = ssub.s32 1, %s3
  %s6 = scalar_select 0, %s5, %s3
  $region1: #{dynamics_back_forward.1} parent=0
    #allocation2 [shape = 'u8[4096]{0}', space=vmem, size = 0x1000, scoped, tag = 'input window, operand 0, single buffered']
    #allocation3 [shape = 's32[1]{0}', space=sflag, size = 0x4, scoped, tag = 'scoped memory for dynamics_back_forward.1']
    #allocation4 [shape = 's32[1]{0}', space=sflag, size = 0x4, scoped, tag = 'scoped memory for dynamics_back_forward.1']
    #allocation5 [shape = 'u8[16384]{0}', space=vmem, size = 0x4000, scoped, tag = 'input window, operand 1, single buffered']
    #allocation6 [shape = 's32[1]{0}', space=sflag, size = 0x4, scoped, tag = 'scoped memory for dynamics_back_forward.1']
    #allocation7 [shape = 'u8[4096]{0}', space=vmem, size = 0x1000, scoped, tag = 'output window, operand 0, single buffered']
    %7 = vsyncpa [#allocation3], 0
    %8 = vsyncpa [#allocation6], 0
    %9 = vsyncpa [#allocation4], 0
    // Predicated region
    $region2: #{dynamics_back_forward.1} parent=1 // pred_check
      _
    $region3: #{dynamics_back_forward.1} parent=1 // pred_check_branch
      %11 = sbr.rel (0) target = $region5
    $region4: #{dynamics_back_forward.1} parent=1 // pred_region
      %s13 = ssub.s32 128, 128
      %14 = vsyncadd [#allocation3], %s13
      %s16 = sshll.u32 [#allocation2], 4
      %s17 = int_to_ptr.vmem [resolvable:$true] %s16
      %19 = dma.hbm_to_vmem [thread:$0]  %s0, 128, %s17, [#allocation3]
    $region5: #{dynamics_back_forward.1} parent=1 // pred_fallthru
      _
    // Predicated region
    $region6: #{dynamics_back_forward.1} parent=1 // pred_check
      _
    $region7: #{dynamics_back_forward.1} parent=1 // pred_check_branch
      %21 = sbr.rel (0) target = $region9
    $region8: #{dynamics_back_forward.1} parent=1 // pred_region
      %s23 = ssub.s32 512, 512
      %24 = vsyncadd [#allocation6], %s23
      %s25 = sshll.u32 [#allocation5], 4
      %s26 = int_to_ptr.vmem [resolvable:$true] %s25
      %31 = dma.hbm_to_vmem [thread:$0]  %s1, 512, %s26, [#allocation6], 128, 128, 8
    $region9: #{dynamics_back_forward.1} parent=1 // pred_fallthru
      _
    // Predicated region
    $region10: #{dynamics_back_forward.1} parent=1 // pred_check
      _
    $region11: #{dynamics_back_forward.1} parent=1 // pred_check_branch
      %33 = sbr.rel (0) target = $region13
    $region12: #{dynamics_back_forward.1} parent=1 // pred_region
      %34 = dma.done [#allocation3], 128
    $region13: #{dynamics_back_forward.1} parent=1 // pred_fallthru
      _
    // Predicated region
    $region14: #{dynamics_back_forward.1} parent=1 // pred_check
      _
    $region15: #{dynamics_back_forward.1} parent=1 // pred_check_branch
      %36 = sbr.rel (0) target = $region17
    $region16: #{dynamics_back_forward.1} parent=1 // pred_region
      %37 = dma.done [#allocation6], 512
    $region17: #{dynamics_back_forward.1} parent=1 // pred_fallthru
      _
    %v38 = vld [vmem:[#allocation2] sm:$0xff]
    %v39 = vld [vmem:[#allocation5] sm:$0xff]
    %v40 = vld [vmem:[#allocation5 + $0x8] sm:$0xff]
    %v41 = vld [vmem:[#allocation5 + $0x10] sm:$0xff]
    %v42 = vld [vmem:[#allocation5 + $0x18] sm:$0xff]
    %vm43 = vcmask 392192
    %v45 = vsel %vm43, %v38, 0
    %v48 = vsel %vm43, %v39, 0
    %v51 = vsel %vm43, %v40, 0
    %v54 = vsel %vm43, %v41, 0
    %v57 = vsel %vm43, %v42, 0
    %59 = vmatprep.subr.mxu0 0.0
    %60 = vmatpush1.xpose.msra.mxu0 %v48
    %61 = vmatprep.subr.mxu0 0.0
    %62 = vmatpush1.xpose.msra.mxu0 %v51
    %63 = vmatprep.subr.mxu0 0.0
    %64 = vmatpush1.xpose.msra.mxu0 %v54
    %65 = vmatprep.subr.mxu0 0.0
    %66 = vmatpush1.xpose.msra.mxu0 %v57
    %67 = vmatprep.subr.mxu0 0.0
    %68 = vmatpush1.xpose.msra.mxu0 0.0
    %69 = vmatprep.subr.mxu0 0.0
    %70 = vmatpush1.xpose.msra.mxu0 0.0
    %71 = vmatprep.subr.mxu0 0.0
    %72 = vmatpush1.xpose.msra.mxu0 0.0
    %73 = vmatprep.subr.mxu0 0.0
    %74 = vmatpush1.xpose.msra.mxu0 0.0
    %75 = vmatprep.subr.mxu0 0.0
    %76 = vmatpush1.xpose.msra.mxu0 0.0
    %77 = vmatprep.subr.mxu0 0.0
    %78 = vmatpush1.xpose.msra.mxu0 0.0
    %79 = vmatprep.subr.mxu0 0.0
    %80 = vmatpush1.xpose.msra.mxu0 0.0
    %81 = vmatprep.subr.mxu0 0.0
    %82 = vmatpush1.xpose.msra.mxu0 0.0
    %83 = vmatprep.subr.mxu0 0.0
    %84 = vmatpush1.xpose.msra.mxu0 0.0
    %85 = vmatprep.subr.mxu0 0.0
    %86 = vmatpush1.xpose.msra.mxu0 0.0
    %87 = vmatprep.subr.mxu0 0.0
    %88 = vmatpush1.xpose.msra.mxu0 0.0
    %89 = vmatprep.subr.mxu0 0.0
    %90 = vmatpush1.xpose.msra.mxu0 0.0
    %91 = vmatprep.subr.mxu0 0.0
    %92 = vmatpush1.xpose.msra.mxu0 0.0
    %93 = vmatprep.subr.mxu0 0.0
    %94 = vmatpush1.xpose.msra.mxu0 0.0
    %95 = vmatprep.subr.mxu0 0.0
    %96 = vmatpush1.xpose.msra.mxu0 0.0
    %97 = vmatprep.subr.mxu0 0.0
    %98 = vmatpush1.xpose.msra.mxu0 0.0
    %99 = vmatprep.subr.mxu0 0.0
    %100 = vmatpush1.xpose.msra.mxu0 0.0
    %101 = vmatprep.subr.mxu0 0.0
    %102 = vmatpush1.xpose.msra.mxu0 0.0
    %103 = vmatprep.subr.mxu0 0.0
    %104 = vmatpush1.xpose.msra.mxu0 0.0
    %105 = vmatprep.subr.mxu0 0.0
    %106 = vmatpush1.xpose.msra.mxu0 0.0
    %107 = vmatprep.subr.mxu0 0.0
    %108 = vmatpush1.xpose.msra.mxu0 0.0
    %109 = vmatprep.subr.mxu0 0.0
    %110 = vmatpush1.xpose.msra.mxu0 0.0
    %111 = vmatprep.subr.mxu0 0.0
    %112 = vmatpush1.xpose.msra.mxu0 0.0
    %113 = vmatprep.subr.mxu0 0.0
    %114 = vmatpush1.xpose.msra.mxu0 0.0
    %115 = vmatprep.subr.mxu0 0.0
    %116 = vmatpush1.xpose.msra.mxu0 0.0
    %117 = vmatprep.subr.mxu0 0.0
    %118 = vmatpush1.xpose.msra.mxu0 0.0
    %119 = vmatprep.subr.mxu0 0.0
    %120 = vmatpush1.xpose.msra.mxu0 0.0
    %121 = vmatprep.subr.mxu0 0.0
    %122 = vmatpush1.xpose.msra.mxu0 0.0
    %123 = vmatprep.mubr.f32.mxu0 0.0
    %124 = vmatmul.mubr.f32.gmra.mrb[0].mxu0 %v45
    %v125 = vpop.f32.mrb[0].mxu0
    %v126 = vadd.f32 0.0, %v125
    %v127 = vpop.f32.mrb[0].mxu0
    %128 = vdwg.mxu0
    %vm129 = vcmask 261120
    %130 = vst.msk [vmem:[#allocation7] sm:$0xff] %vm129, %v126
    // Predicated region
    $region18: #{dynamics_back_forward.1} parent=1 // pred_check
      _
    $region19: #{dynamics_back_forward.1} parent=1 // pred_check_branch
      %132 = sbr.rel (0) target = $region21
    $region20: #{dynamics_back_forward.1} parent=1 // pred_region
      %s134 = ssub.s32 128, 128
      %135 = vsyncadd [#allocation4], %s134
      %s137 = sshll.u32 [#allocation7], 4
      %s138 = int_to_ptr.vmem [resolvable:$true] %s137
      %140 = dma.vmem_to_hbm [thread:$0]  %s138, 128, %s2, [#allocation4]
    $region21: #{dynamics_back_forward.1} parent=1 // pred_fallthru
      _
    // Predicated region
    $region22: #{dynamics_back_forward.1} parent=1 // pred_check
      _
    $region23: #{dynamics_back_forward.1} parent=1 // pred_check_branch
      %142 = sbr.rel (0) target = $region25
    $region24: #{dynamics_back_forward.1} parent=1 // pred_region
      %143 = dma.done [#allocation4], 128
    $region25: #{dynamics_back_forward.1} parent=1 // pred_fallthru
      _
    %144 = vsyncpa [#allocation3], 1
    %145 = vsyncpa [#allocation6], 1
    %146 = vsyncpa [#allocation4], 1

</llo_original>
